<compile_context>
chip_gen: v7x
topology: tpu7x:2x2x1
jax: 0.10.0
libtpu: 0.0.40
codegen_flags: <defaults>
</compile_context>

<pallas_src>
import jax
import jax.numpy as jnp
from jax.experimental import pallas as pl
from jax.experimental.pallas import tpu as pltpu


def _cdiv(a, b):
    return -(-a // b)


def _round_up(n, m):
    return _cdiv(n, m) * m


def _dqn_kernel(x_ref, w1_ref, b1_ref, w2_ref, b2_ref, w3_ref, b3_ref, o_ref):
    """One batch tile in packed layout: x (TR, 4P) -> out (TR, P*outputs)."""
    # Layer 1 on the MXU (block-diagonal weight, K = 4P).  bf16 x -> bf16 MXU,
    # f32 x -> f32 MXU; accumulation is f32 either way.
    h = jnp.dot(x_ref[...], w1_ref[...], preferred_element_type=jnp.float32)
    h = jnp.maximum(h + b1_ref[...], 0.0)                    # (TR, 32P) f32

    # Layer 2: (32P, 32P) block-diagonal weight on the MXU.  Activations stay
    # f32 (casting them to bf16 would cost VALU and save zero HBM bytes).
    h = jnp.dot(h, w2_ref[...], preferred_element_type=jnp.float32)
    h = jnp.maximum(h + b2_ref[...], 0.0)                    # (TR, 32P) f32

    # Output layer + bias.
    out = jnp.dot(h, w3_ref[...], preferred_element_type=jnp.float32)
    out = out + b3_ref[...]                                  # (TR, P*outputs)

    o_ref[...] = out.astype(o_ref.dtype)


def _choose_tile_rows(n_rows, block_rows, min_grid_steps):
    # At least `min_grid_steps` grid steps when there is enough work so the
    # "parallel" grid axis can shard across v7x's two TensorCores; sublane
    # granularity 16 (covers bf16 tiling as well as f32).
    split = _cdiv(n_rows, max(1, min_grid_steps))
    tr = min(max(1, block_rows), max(1, split))
    return max(16, _round_up(tr, 16))


def dqn_forward(x, params, *, block_b=8192, pack=4, out_dtype=jnp.float32,
                min_grid_steps=2):
    """DQN forward pass.  x: (B, 4) (f32 or bf16).  Returns (B, outputs).

    `block_b` is the batch tile in samples (sweep 2048-16384 per generation);
    `pack` folds that many samples onto the lane axis (falls back to 2/1 for
    batches not divisible by it, so no padding copy is ever made);
    `out_dtype=jnp.bfloat16` halves output HBM traffic.
    """
    B, feat = x.shape
    assert feat == 4, "DQN expects 4 input features"
    outputs = params["w3"].shape[0]
    f32 = jnp.float32
    in_dt = x.dtype                       # stream x exactly as provided

    # Packing factor (power of two) that divides B -> no batch padding needed.
    P = pack
    while P > 1 and B % P != 0:
        P //= 2

    # Tiny block-diagonal weights (at most (32P, 32P) ~ 64 KiB at P=4).  They
    # are built per call here for self-containment; in a real pipeline they
    # would be precomputed once alongside the parameters.
    w1b = jnp.kron(jnp.eye(P, dtype=in_dt), params["w1"].T.astype(in_dt))
    w2b = jnp.kron(jnp.eye(P, dtype=f32), params["w2"].T.astype(f32))
    w3b = jnp.kron(jnp.eye(P, dtype=f32), params["w3"].T.astype(f32))
    b1b = jnp.tile(params["b1"].astype(f32), P).reshape(1, -1)   # (1, 32P)
    b2b = jnp.tile(params["b2"].astype(f32), P).reshape(1, -1)   # (1, 32P)
    b3b = jnp.tile(params["b3"].astype(f32), P).reshape(1, -1)   # (1, P*out)

    # Free (order-preserving) reshape: (B, 4) -> (R, 4P).  No transpose/pad.
    R = B // P
    x_p = x.reshape(R, 4 * P)

    tr = _choose_tile_rows(R, block_b // max(P, 1), min_grid_steps)
    grid = (_cdiv(R, tr),)                # partial last block handles ragged B

    vmem = pltpu.MemorySpace.VMEM
    x_spec = pl.BlockSpec((tr, 4 * P), lambda i: (i, 0), memory_space=vmem)
    o_spec = pl.BlockSpec((tr, P * outputs), lambda i: (i, 0), memory_space=vmem)

    def pinned(a):
        # Constant index_map: fetched once, stays VMEM-resident across steps.
        return pl.BlockSpec(a.shape, lambda i: (0, 0), memory_space=vmem)

    y_p = pl.pallas_call(
        _dqn_kernel,
        out_shape=jax.ShapeDtypeStruct((R, P * outputs), out_dtype),
        grid=grid,
        in_specs=[x_spec,
                  pinned(w1b), pinned(b1b),
                  pinned(w2b), pinned(b2b),
                  pinned(w3b), pinned(b3b)],
        out_specs=o_spec,
        compiler_params=pltpu.CompilerParams(
            dimension_semantics=("parallel",)),
    )(x_p, w1b, b1b, w2b, b2b, w3b, b3b)

    # Free reshape back to PyTorch layout; `.view(B, -1)` is a no-op for 2-D.
    return y_p.reshape(B, outputs)


def init_params(key, outputs):
    """PyTorch nn.Linear-style uniform(-1/sqrt(fan_in), 1/sqrt(fan_in)) init."""
    def linear(k, fan_in, fan_out):
        kw, kb = jax.random.split(k)
        bound = 1.0 / jnp.sqrt(float(fan_in))
        w = jax.random.uniform(kw, (fan_out, fan_in), jnp.float32, -bound, bound)
        b = jax.random.uniform(kb, (fan_out,), jnp.float32, -bound, bound)
        return w, b

    k1, k2, k3 = jax.random.split(key, 3)
    w1, b1 = linear(k1, 4, 32)
    w2, b2 = linear(k2, 32, 32)
    w3, b3 = linear(k3, 32, outputs)
    return {"w1": w1, "b1": b1, "w2": w2, "b2": b2, "w3": w3, "b3": b3}


def dqn_reference(x, p):
    """Pure-JAX reference (standard (B, F) orientation) for correctness."""
    h = jnp.maximum(x @ p["w1"].T + p["b1"], 0.0)
    h = jnp.maximum(h @ p["w2"].T + p["b2"], 0.0)
    out = h @ p["w3"].T + p["b3"]
    return out.reshape(out.shape[0], -1)


if __name__ == "__main__":
    key = jax.random.PRNGKey(0)
    k_x, k_p, k_x2 = jax.random.split(key, 3)

    outputs = 4
    params = init_params(k_p, outputs)

    fwd = jax.jit(dqn_forward,
                  static_argnames=("block_b", "pack", "out_dtype",
                                   "min_grid_steps"))

    # Small case (batch=2): packing falls back to P=2, single grid step.
    x = jax.random.normal(k_x, (2, 4), jnp.float32)
    y = jax.block_until_ready(fwd(x, params))
    y_ref = dqn_reference(x, params)
    assert y.shape == (2, outputs), y.shape
    assert jnp.allclose(y, y_ref, atol=1e-4, rtol=1e-4), (y, y_ref)

    # Ragged multi-tile case (batch=200): P=4, two grid steps (megacore path),
    # partial last block exercises the no-padding ragged-tail handling.
    xb = jax.random.normal(k_x2, (200, 4), jnp.float32)
    yb = jax.block_until_ready(fwd(xb, params))
    yb_ref = dqn_reference(xb, params)
    assert yb.shape == (200, outputs), yb.shape
    assert jnp.allclose(yb, yb_ref, atol=1e-4, rtol=1e-4)

    # bf16 streaming: caller provides bf16 x (no wrapper cast pass); layer 1
    # runs bf16xbf16 on the MXU with f32 accumulation; bf16 output halves
    # output HBM traffic.  Looser tolerance for the reduced-precision path.
    xb16 = xb.astype(jnp.bfloat16)
    yb16 = jax.block_until_ready(fwd(xb16, params, out_dtype=jnp.bfloat16))
    assert yb16.dtype == jnp.bfloat16
    assert jnp.allclose(yb16.astype(jnp.float32), yb_ref, atol=1e-1, rtol=1e-1)

    print("KERNEL_OK")
</pallas_src>

<mosaic_0001>
module attributes {stable_mosaic.version = 11 : i64} {
  func.func @_dqn_kernel(%arg0: i32, %arg1: memref<16x8xf32, #tpu.memory_space<vmem>>, %arg2: memref<8x64xf32, #tpu.memory_space<vmem>>, %arg3: memref<1x64xf32, #tpu.memory_space<vmem>>, %arg4: memref<64x64xf32, #tpu.memory_space<vmem>>, %arg5: memref<1x64xf32, #tpu.memory_space<vmem>>, %arg6: memref<64x8xf32, #tpu.memory_space<vmem>>, %arg7: memref<1x8xf32, #tpu.memory_space<vmem>>, %arg8: memref<16x8xf32, #tpu.memory_space<vmem>>) attributes {dimension_semantics = [#tpu.dimension_semantics<parallel>], iteration_bounds = array<i64: 1>, scalar_prefetch = 0 : i64, scratch_operands = 0 : i64, tpu.core_type = #tpu.core_type<tc>, window_params = [{transform_indices = @transform_0, window_bounds = array<i64: 16, 8>}, {pipeline_mode = #tpu.pipeline_mode<synchronous>, transform_indices = @transform_1, window_bounds = array<i64: 8, 64>}, {pipeline_mode = #tpu.pipeline_mode<synchronous>, transform_indices = @transform_2, window_bounds = array<i64: 1, 64>}, {pipeline_mode = #tpu.pipeline_mode<synchronous>, transform_indices = @transform_3, window_bounds = array<i64: 64, 64>}, {pipeline_mode = #tpu.pipeline_mode<synchronous>, transform_indices = @transform_4, window_bounds = array<i64: 1, 64>}, {pipeline_mode = #tpu.pipeline_mode<synchronous>, transform_indices = @transform_5, window_bounds = array<i64: 64, 8>}, {pipeline_mode = #tpu.pipeline_mode<synchronous>, transform_indices = @transform_6, window_bounds = array<i64: 1, 8>}, {transform_indices = @transform_7, window_bounds = array<i64: 16, 8>}]} {
    %c0 = arith.constant 0 : index
    %c0_0 = arith.constant 0 : index
    %0 = vector.load %arg1[%c0, %c0_0] : memref<16x8xf32, #tpu.memory_space<vmem>>, vector<16x8xf32>
    %c0_1 = arith.constant 0 : index
    %c0_2 = arith.constant 0 : index
    %1 = vector.load %arg2[%c0_1, %c0_2] : memref<8x64xf32, #tpu.memory_space<vmem>>, vector<8x64xf32>
    %cst = arith.constant dense<0.000000e+00> : vector<16x64xf32>
    %2 = tpu.matmul %0, %1, %cst {dimension_numbers = #tpu.dot_dimension_numbers<[1], [0], [0], [1], [0, 0, 1, 1], [], []>} : vector<16x8xf32>, vector<8x64xf32>, vector<16x64xf32> -> vector<16x64xf32>
    %c0_3 = arith.constant 0 : index
    %c0_4 = arith.constant 0 : index
    %3 = vector.load %arg3[%c0_3, %c0_4] : memref<1x64xf32, #tpu.memory_space<vmem>>, vector<1x64xf32>
    %4 = vector.broadcast %3 : vector<1x64xf32> to vector<16x64xf32>
    %5 = arith.addf %2, %4 : vector<16x64xf32>
    %cst_5 = arith.constant 0.000000e+00 : f32
    %6 = vector.broadcast %cst_5 : f32 to vector<16x64xf32>
    %7 = arith.maximumf %5, %6 : vector<16x64xf32>
    %c0_6 = arith.constant 0 : index
    %c0_7 = arith.constant 0 : index
    %8 = vector.load %arg4[%c0_6, %c0_7] : memref<64x64xf32, #tpu.memory_space<vmem>>, vector<64x64xf32>
    %cst_8 = arith.constant dense<0.000000e+00> : vector<16x64xf32>
    %9 = tpu.matmul %7, %8, %cst_8 {dimension_numbers = #tpu.dot_dimension_numbers<[1], [0], [0], [1], [0, 0, 1, 1], [], []>} : vector<16x64xf32>, vector<64x64xf32>, vector<16x64xf32> -> vector<16x64xf32>
    %c0_9 = arith.constant 0 : index
    %c0_10 = arith.constant 0 : index
    %10 = vector.load %arg5[%c0_9, %c0_10] : memref<1x64xf32, #tpu.memory_space<vmem>>, vector<1x64xf32>
    %11 = vector.broadcast %10 : vector<1x64xf32> to vector<16x64xf32>
    %12 = arith.addf %9, %11 : vector<16x64xf32>
    %cst_11 = arith.constant 0.000000e+00 : f32
    %13 = vector.broadcast %cst_11 : f32 to vector<16x64xf32>
    %14 = arith.maximumf %12, %13 : vector<16x64xf32>
    %c0_12 = arith.constant 0 : index
    %c0_13 = arith.constant 0 : index
    %15 = vector.load %arg6[%c0_12, %c0_13] : memref<64x8xf32, #tpu.memory_space<vmem>>, vector<64x8xf32>
    %cst_14 = arith.constant dense<0.000000e+00> : vector<16x8xf32>
    %16 = tpu.matmul %14, %15, %cst_14 {dimension_numbers = #tpu.dot_dimension_numbers<[1], [0], [0], [1], [0, 0, 1, 1], [], []>} : vector<16x64xf32>, vector<64x8xf32>, vector<16x8xf32> -> vector<16x8xf32>
    %c0_15 = arith.constant 0 : index
    %c0_16 = arith.constant 0 : index
    %17 = vector.load %arg7[%c0_15, %c0_16] : memref<1x8xf32, #tpu.memory_space<vmem>>, vector<1x8xf32>
    %18 = vector.broadcast %17 : vector<1x8xf32> to vector<16x8xf32>
    %19 = arith.addf %16, %18 : vector<16x8xf32>
    %c0_17 = arith.constant 0 : index
    %c0_18 = arith.constant 0 : index
    %20 = vector.load %arg8[%c0_17, %c0_18] : memref<16x8xf32, #tpu.memory_space<vmem>>, vector<16x8xf32>
    tpu.vector_store %arg8[%c0_17, %c0_18], %19 {strides = array<i32>} : memref<16x8xf32, #tpu.memory_space<vmem>>, vector<16x8xf32>,
    return
  }
  func.func @transform_0(%arg0: i32) -> (i32, i32) {
    %c0_i32 = arith.constant 0 : i32
    %c0_i32_0 = arith.constant 0 : i32
    return %arg0, %c0_i32 : i32, i32
  }
  func.func @transform_1(%arg0: i32) -> (i32, i32) {
    %c0_i32 = arith.constant 0 : i32
    %c0_i32_0 = arith.constant 0 : i32
    %c0_i32_1 = arith.constant 0 : i32
    return %c0_i32, %c0_i32_0 : i32, i32
  }
  func.func @transform_2(%arg0: i32) -> (i32, i32) {
    %c0_i32 = arith.constant 0 : i32
    %c0_i32_0 = arith.constant 0 : i32
    %c0_i32_1 = arith.constant 0 : i32
    return %c0_i32, %c0_i32_0 : i32, i32
  }
  func.func @transform_3(%arg0: i32) -> (i32, i32) {
    %c0_i32 = arith.constant 0 : i32
    %c0_i32_0 = arith.constant 0 : i32
    %c0_i32_1 = arith.constant 0 : i32
    return %c0_i32, %c0_i32_0 : i32, i32
  }
  func.func @transform_4(%arg0: i32) -> (i32, i32) {
    %c0_i32 = arith.constant 0 : i32
    %c0_i32_0 = arith.constant 0 : i32
    %c0_i32_1 = arith.constant 0 : i32
    return %c0_i32, %c0_i32_0 : i32, i32
  }
  func.func @transform_5(%arg0: i32) -> (i32, i32) {
    %c0_i32 = arith.constant 0 : i32
    %c0_i32_0 = arith.constant 0 : i32
    %c0_i32_1 = arith.constant 0 : i32
    return %c0_i32, %c0_i32_0 : i32, i32
  }
  func.func @transform_6(%arg0: i32) -> (i32, i32) {
    %c0_i32 = arith.constant 0 : i32
    %c0_i32_0 = arith.constant 0 : i32
    %c0_i32_1 = arith.constant 0 : i32
    return %c0_i32, %c0_i32_0 : i32, i32
  }
  func.func @transform_7(%arg0: i32) -> (i32, i32) {
    %c0_i32 = arith.constant 0 : i32
    %c0_i32_0 = arith.constant 0 : i32
    return %arg0, %c0_i32 : i32, i32
  }
}

</mosaic_0001>

<llo_original>
// kernel: tile.18
$region0: #{tile.18}
  #allocation0 [shape = 's32[1]{0}', space=sflag, size = 0x4, scoped, tag = 'scoped memory for tile.18']
  %s0 = inlined_call_operand.vmem [shape: f32[32], index: 0, kind: input, shape index: {}]
  %s1 = inlined_call_operand.vmem [shape: f32[2,32], index: 1, kind: output, shape index: {}]
  // Predicated region
  $region2: #{tile.18} parent=0 // pred_check
    _
  $region3: #{tile.18} parent=0 // pred_check_branch
    %3 = sbr.rel (0) target = $region5
  $region4: #{tile.18} parent=0 // pred_region
    _
  $region5: #{tile.18} parent=0 // pred_fallthru
    _
  %v4 = vld [vmem:[%s0] ss:$0 sm:$0xff]
  %5 = vst [vmem:[%s1] sm:$0x3] %v4

// kernel: tile.19
$region0: #{tile.19}
  %s0 = inlined_call_operand.vmem [shape: f32[2,32], index: 0, kind: input, shape index: {}]
  %s1 = inlined_call_operand.vmem [shape: f32[1,64], index: 1, kind: output, shape index: {}]
  $region1: #{tile.19} parent=0
    #allocation0 [shape = 'u8[4096]{0}', space=vmem, size = 0x1000, scoped, tag = 'scoped mem for output reshape']
    #allocation1 [shape = 'u8[4096]{0}', space=vmem, size = 0x1000, scoped, tag = 'scoped mem for input reshape']
    %s3 = sshllo.u32 0, 2
    %v4 = vld [vmem:[%s0] sm:%s3]
    %5 = vst [vmem:[#allocation1] sm:%s3] %v4
    %v6 = vld [vmem:[#allocation1] sm:$0x1]
    %vm7 = vcmask 261120
    %8 = vst.msk [vmem:[#allocation0] sm:$0x1] %vm7, %v6
    %s9 = scalar_lea.vmem [#allocation1], 1
    %v10 = vld [vmem:[%s9] sm:$0x1]
    %11 = vrot.lane.b32.xlu0 %v10, 32
    %v12 = vpop.permute.xlu0 %11
    %vm13 = vcmask 523520
    %14 = vst.msk [vmem:[#allocation0] sm:$0x1] %vm13, %v12
    %s16 = sshllo.u32 0, 1
    %v18 = vld [vmem:[#allocation0] sm:%s16]
    %s19 = sshllo.u32 0, 1
    %20 = vst [vmem:[%s1] sm:%s19] %v18

// kernel: tile.28
$region0: #{tile.28}
  #allocation0 [shape = 's32[1]{0}', space=sflag, size = 0x4, scoped, tag = 'scoped memory for tile.28']
  %s0 = inlined_call_operand.vmem [shape: f32[4], index: 0, kind: input, shape index: {}]
  %s1 = inlined_call_operand.vmem [shape: f32[2,4], index: 1, kind: output, shape index: {}]
  // Predicated region
  $region2: #{tile.28} parent=0 // pred_check
    _
  $region3: #{tile.28} parent=0 // pred_check_branch
    %3 = sbr.rel (0) target = $region5
  $region4: #{tile.28} parent=0 // pred_region
    _
  $region5: #{tile.28} parent=0 // pred_fallthru
    _
  %v4 = vld [vmem:[%s0] ss:$0 sm:$0xff]
  %5 = vst [vmem:[%s1] sm:$0x3] %v4

// kernel: tile.29
$region0: #{tile.29}
  %s0 = inlined_call_operand.vmem [shape: f32[2,4], index: 0, kind: input, shape index: {}]
  %s1 = inlined_call_operand.vmem [shape: f32[1,8], index: 1, kind: output, shape index: {}]
  $region1: #{tile.29} parent=0
    #allocation0 [shape = 'u8[4096]{0}', space=vmem, size = 0x1000, scoped, tag = 'scoped mem for output reshape']
    #allocation1 [shape = 'u8[4096]{0}', space=vmem, size = 0x1000, scoped, tag = 'scoped mem for input reshape']
    %s3 = sshllo.u32 0, 2
    %v4 = vld [vmem:[%s0] sm:%s3]
    %5 = vst [vmem:[#allocation1] sm:%s3] %v4
    %v6 = vld [vmem:[#allocation1] sm:$0x1]
    %vm7 = vcmask 31744
    %8 = vst.msk [vmem:[#allocation0] sm:$0x1] %vm7, %v6
    %s9 = scalar_lea.vmem [#allocation1], 1
    %v10 = vld [vmem:[%s9] sm:$0x1]
    %11 = vrot.lane.b32.xlu0 %v10, 4
    %v12 = vpop.permute.xlu0 %11
    %vm13 = vcmask 64544
    %14 = vst.msk [vmem:[#allocation0] sm:$0x1] %vm13, %v12
    %s16 = sshllo.u32 0, 1
    %v18 = vld [vmem:[#allocation0] sm:%s16]
    %s19 = sshllo.u32 0, 1
    %20 = vst [vmem:[%s1] sm:%s19] %v18

// kernel: dqn_forward.1
$region0: #{dqn_forward.1}
  #allocation0 [shape = 'u32[]', space=smem, size = 0x4, offset = 0x4, fixed_abs, tag = 'smem constant byte address 0x4 - core index']
  #allocation1 [shape = 'u32[144,128]{1,0:T(1,128)}', space=vmem, size = 0x12000, scoped, tag = 'internal scratch']
  %s0 = inlined_call_operand.vmem [shape: f32[1,8], index: 0, kind: input, shape index: {}]
  %s1 = inlined_call_operand.vmem [shape: f32[8,64], index: 1, kind: input, shape index: {}]
  %s2 = inlined_call_operand.vmem [shape: f32[1,64], index: 2, kind: input, shape index: {}]
  %s3 = inlined_call_operand.vmem [shape: f32[64,64], index: 3, kind: input, shape index: {}]
  %s4 = inlined_call_operand.vmem [shape: f32[1,64], index: 4, kind: input, shape index: {}]
  %s5 = inlined_call_operand.vmem [shape: f32[64,8], index: 5, kind: input, shape index: {}]
  %s6 = inlined_call_operand.vmem [shape: f32[1,8], index: 6, kind: input, shape index: {}]
  %s7 = inlined_call_operand.vmem [shape: f32[1,8], index: 7, kind: output, shape index: {}]
  %s8 = sld [smem:[#allocation0]]
  $region68: #{dqn_forward.1} parent=0
    _
  %s10 = ssub.s32 1, %s8
  %s11 = scalar_select 0, %s10, %s8
  $region1: #{dqn_forward.1} parent=0
    #allocation2 [shape = 'u8[8192]{0}', space=vmem, size = 0x2000, scoped, tag = 'output window, operand 0, single buffered']
    // Predicated region
    $region2: #{dqn_forward.1} parent=1 // pred_check
      _
    $region3: #{dqn_forward.1} parent=1 // pred_check_branch
      %13 = sbr.rel (0) target = $region5
    $region4: #{dqn_forward.1} parent=1 // pred_region
      _
    $region5: #{dqn_forward.1} parent=1 // pred_fallthru
      _
    // Predicated region
    $region6: #{dqn_forward.1} parent=1 // pred_check
      _
    $region7: #{dqn_forward.1} parent=1 // pred_check_branch
      %15 = sbr.rel (0) target = $region9
    $region8: #{dqn_forward.1} parent=1 // pred_region
      _
    $region9: #{dqn_forward.1} parent=1 // pred_fallthru
      _
    // Predicated region
    $region10: #{dqn_forward.1} parent=1 // pred_check
      _
    $region11: #{dqn_forward.1} parent=1 // pred_check_branch
      %17 = sbr.rel (0) target = $region13
    $region12: #{dqn_forward.1} parent=1 // pred_region
      _
    $region13: #{dqn_forward.1} parent=1 // pred_fallthru
      _
    // Predicated region
    $region14: #{dqn_forward.1} parent=1 // pred_check
      _
    $region15: #{dqn_forward.1} parent=1 // pred_check_branch
      %19 = sbr.rel (0) target = $region17
    $region16: #{dqn_forward.1} parent=1 // pred_region
      _
    $region17: #{dqn_forward.1} parent=1 // pred_fallthru
      _
    // Predicated region
    $region18: #{dqn_forward.1} parent=1 // pred_check
      _
    $region19: #{dqn_forward.1} parent=1 // pred_check_branch
      %21 = sbr.rel (0) target = $region21
    $region20: #{dqn_forward.1} parent=1 // pred_region
      _
    $region21: #{dqn_forward.1} parent=1 // pred_fallthru
      _
    // Predicated region
    $region22: #{dqn_forward.1} parent=1 // pred_check
      _
    $region23: #{dqn_forward.1} parent=1 // pred_check_branch
      %23 = sbr.rel (0) target = $region25
    $region24: #{dqn_forward.1} parent=1 // pred_region
      _
    $region25: #{dqn_forward.1} parent=1 // pred_fallthru
      _
    // Predicated region
    $region26: #{dqn_forward.1} parent=1 // pred_check
      _
    $region27: #{dqn_forward.1} parent=1 // pred_check_branch
      %25 = sbr.rel (0) target = $region29
    $region28: #{dqn_forward.1} parent=1 // pred_region
      _
    $region29: #{dqn_forward.1} parent=1 // pred_fallthru
      _
    %v26 = vld [vmem:[%s0] sm:$0xff]
    %v27 = vld [vmem:[%s0 + $0x8] sm:$0xff]
    %v28 = vld [vmem:[%s1] sm:$0xff]
    %v29 = vld [vmem:[%s2] sm:$0x1]
    %v31 = vlaneseq
    %v32 = vshrl.u32 %v31, 7
    %v33 = vsub.s32 0, %v32
    %v34 = vrot.slane %v29, %v33
    %vm36 = vcmask 64512
    %v38 = vsel %vm36, %v26, 0
    %v41 = vsel %vm36, %v27, 0
    %43 = vmatprep.subr.mxu0 0.0
    %44 = vmatpush1.msra.mxu0 %v28
    %45 = vmatprep.subr.mxu0 0.0
    %46 = vmatpush1.msra.mxu0 0.0
    %47 = vmatprep.subr.mxu0 0.0
    %48 = vmatpush1.msra.mxu0 0.0
    %49 = vmatprep.subr.mxu0 0.0
    %50 = vmatpush1.msra.mxu0 0.0
    %51 = vmatprep.subr.mxu0 0.0
    %52 = vmatpush1.msra.mxu0 0.0
    %53 = vmatprep.subr.mxu0 0.0
    %54 = vmatpush1.msra.mxu0 0.0
    %55 = vmatprep.subr.mxu0 0.0
    %56 = vmatpush1.msra.mxu0 0.0
    %57 = vmatprep.subr.mxu0 0.0
    %58 = vmatpush1.msra.mxu0 0.0
    %59 = vmatprep.subr.mxu0 0.0
    %60 = vmatpush1.msra.mxu0 0.0
    %61 = vmatprep.subr.mxu0 0.0
    %62 = vmatpush1.msra.mxu0 0.0
    %63 = vmatprep.subr.mxu0 0.0
    %64 = vmatpush1.msra.mxu0 0.0
    %65 = vmatprep.subr.mxu0 0.0
    %66 = vmatpush1.msra.mxu0 0.0
    %67 = vmatprep.subr.mxu0 0.0
    %68 = vmatpush1.msra.mxu0 0.0
    %69 = vmatprep.subr.mxu0 0.0
    %70 = vmatpush1.msra.mxu0 0.0
    %71 = vmatprep.subr.mxu0 0.0
    %72 = vmatpush1.msra.mxu0 0.0
    %73 = vmatprep.subr.mxu0 0.0
    %74 = vmatpush1.msra.mxu0 0.0
    %75 = vmatprep.subr.mxu0 0.0
    %76 = vmatpush1.msra.mxu0 0.0
    %77 = vmatprep.subr.mxu0 0.0
    %78 = vmatpush1.msra.mxu0 0.0
    %79 = vmatprep.subr.mxu0 0.0
    %80 = vmatpush1.msra.mxu0 0.0
    %81 = vmatprep.subr.mxu0 0.0
    %82 = vmatpush1.msra.mxu0 0.0
    %83 = vmatprep.subr.mxu0 0.0
    %84 = vmatpush1.msra.mxu0 0.0
    %85 = vmatprep.subr.mxu0 0.0
    %86 = vmatpush1.msra.mxu0 0.0
    %87 = vmatprep.subr.mxu0 0.0
    %88 = vmatpush1.msra.mxu0 0.0
    %89 = vmatprep.subr.mxu0 0.0
    %90 = vmatpush1.msra.mxu0 0.0
    %91 = vmatprep.subr.mxu0 0.0
    %92 = vmatpush1.msra.mxu0 0.0
    %93 = vmatprep.subr.mxu0 0.0
    %94 = vmatpush1.msra.mxu0 0.0
    %95 = vmatprep.subr.mxu0 0.0
    %96 = vmatpush1.msra.mxu0 0.0
    %97 = vmatprep.subr.mxu0 0.0
    %98 = vmatpush1.msra.mxu0 0.0
    %99 = vmatprep.subr.mxu0 0.0
    %100 = vmatpush1.msra.mxu0 0.0
    %101 = vmatprep.subr.mxu0 0.0
    %102 = vmatpush1.msra.mxu0 0.0
    %103 = vmatprep.subr.mxu0 0.0
    %104 = vmatpush1.msra.mxu0 0.0
    %105 = vmatprep.subr.mxu0 0.0
    %106 = vmatpush1.msra.mxu0 0.0
    %107 = vmatprep.mubr.f32.mxu0 0.0
    %108 = vmatmul.mubr.f32.gmra.mrb[0].mxu0 %v38
    %v109 = vpop.f32.mrb[0].mxu0
    %v110 = vadd.f32 %v34, %v109
    %v111 = vpop.f32.mrb[0].mxu0
    %112 = vmatprep.mubr.f32.mxu0 0.0
    %113 = vmatmul.mubr.f32.gmra.mrb[0].mxu0 %v41
    %v114 = vpop.f32.mrb[0].mxu0
    %v115 = vadd.f32 %v34, %v114
    %v116 = vpop.f32.mrb[0].mxu0
    %117 = vdwg.mxu0
    %v118 = vmax.f32 %v110, 0.0
    %v119 = vmax.f32 %v115, 0.0
    %v120 = vld [vmem:[%s3] sm:$0xff]
    %v121 = vld [vmem:[%s3 + $0x8] sm:$0xff]
    %v122 = vld [vmem:[%s3 + $0x10] sm:$0xff]
    %v123 = vld [vmem:[%s3 + $0x18] sm:$0xff]
    %v124 = vld [vmem:[%s3 + $0x20] sm:$0xff]
    %v125 = vld [vmem:[%s3 + $0x28] sm:$0xff]
    %v126 = vld [vmem:[%s3 + $0x30] sm:$0xff]
    %v127 = vld [vmem:[%s3 + $0x38] sm:$0xff]
    %v128 = vld [vmem:[%s4] sm:$0x1]
    %v130 = vlaneseq
    %v131 = vshrl.u32 %v130, 7
    %v132 = vsub.s32 0, %v131
    %v133 = vrot.slane %v128, %v132
    %vm135 = vcmask 523264
    %v137 = vsel %vm135, %v118, 0
    %v140 = vsel %vm135, %v119, 0
    %142 = vmatprep.subr.mxu0 0.0
    %143 = vmatpush1.msra.mxu0 %v120
    %144 = vmatprep.subr.mxu0 0.0
    %145 = vmatpush1.msra.mxu0 %v121
    %146 = vmatprep.subr.mxu0 0.0
    %147 = vmatpush1.msra.mxu0 %v122
    %148 = vmatprep.subr.mxu0 0.0
    %149 = vmatpush1.msra.mxu0 %v123
    %150 = vmatprep.subr.mxu0 0.0
    %151 = vmatpush1.msra.mxu0 %v124
    %152 = vmatprep.subr.mxu0 0.0
    %153 = vmatpush1.msra.mxu0 %v125
    %154 = vmatprep.subr.mxu0 0.0
    %155 = vmatpush1.msra.mxu0 %v126
    %156 = vmatprep.subr.mxu0 0.0
    %157 = vmatpush1.msra.mxu0 %v127
    %158 = vmatprep.subr.mxu0 0.0
    %159 = vmatpush1.msra.mxu0 0.0
    %160 = vmatprep.subr.mxu0 0.0
    %161 = vmatpush1.msra.mxu0 0.0
    %162 = vmatprep.subr.mxu0 0.0
    %163 = vmatpush1.msra.mxu0 0.0
    %164 = vmatprep.subr.mxu0 0.0
    %165 = vmatpush1.msra.mxu0 0.0
    %166 = vmatprep.subr.mxu0 0.0
    %167 = vmatpush1.msra.mxu0 0.0
    %168 = vmatprep.subr.mxu0 0.0
    %169 = vmatpush1.msra.mxu0 0.0
    %170 = vmatprep.subr.mxu0 0.0
    %171 = vmatpush1.msra.mxu0 0.0
    %172 = vmatprep.subr.mxu0 0.0
    %173 = vmatpush1.msra.mxu0 0.0
    %174 = vmatprep.subr.mxu0 0.0
    %175 = vmatpush1.msra.mxu0 0.0
    %176 = vmatprep.subr.mxu0 0.0
    %177 = vmatpush1.msra.mxu0 0.0
    %178 = vmatprep.subr.mxu0 0.0
    %179 = vmatpush1.msra.mxu0 0.0
    %180 = vmatprep.subr.mxu0 0.0
    %181 = vmatpush1.msra.mxu0 0.0
    %182 = vmatprep.subr.mxu0 0.0
    %183 = vmatpush1.msra.mxu0 0.0
    %184 = vmatprep.subr.mxu0 0.0
    %185 = vmatpush1.msra.mxu0 0.0
    %186 = vmatprep.subr.mxu0 0.0
    %187 = vmatpush1.msra.mxu0 0.0
    %188 = vmatprep.subr.mxu0 0.0
    %189 = vmatpush1.msra.mxu0 0.0
    %190 = vmatprep.subr.mxu0 0.0
    %191 = vmatpush1.msra.mxu0 0.0
    %192 = vmatprep.subr.mxu0 0.0
    %193 = vmatpush1.msra.mxu0 0.0
    %194 = vmatprep.subr.mxu0 0.0
    %195 = vmatpush1.msra.mxu0 0.0
    %196 = vmatprep.subr.mxu0 0.0
    %197 = vmatpush1.msra.mxu0 0.0
    %198 = vmatprep.subr.mxu0 0.0
    %199 = vmatpush1.msra.mxu0 0.0
    %200 = vmatprep.subr.mxu0 0.0
    %201 = vmatpush1.msra.mxu0 0.0
    %202 = vmatprep.subr.mxu0 0.0
    %203 = vmatpush1.msra.mxu0 0.0
    %204 = vmatprep.subr.mxu0 0.0
    %205 = vmatpush1.msra.mxu0 0.0
    %206 = vmatprep.mubr.f32.mxu0 0.0
    %207 = vmatmul.mubr.f32.gmra.mrb[0].mxu0 %v137
    %v208 = vpop.f32.mrb[0].mxu0
    %v209 = vadd.f32 %v133, %v208
    %v210 = vpop.f32.mrb[0].mxu0
    %211 = vmatprep.mubr.f32.mxu0 0.0
    %212 = vmatmul.mubr.f32.gmra.mrb[0].mxu0 %v140
    %v213 = vpop.f32.mrb[0].mxu0
    %v214 = vadd.f32 %v133, %v213
    %v215 = vpop.f32.mrb[0].mxu0
    %216 = vdwg.mxu0
    %v217 = vmax.f32 %v209, 0.0
    %v218 = vmax.f32 %v214, 0.0
    %v219 = vld [vmem:[%s5] sm:$0xff]
    %v220 = vld [vmem:[%s5 + $0x8] sm:$0xff]
    %v221 = vld [vmem:[%s5 + $0x10] sm:$0xff]
    %v222 = vld [vmem:[%s5 + $0x18] sm:$0xff]
    %v223 = vld [vmem:[%s5 + $0x20] sm:$0xff]
    %v224 = vld [vmem:[%s5 + $0x28] sm:$0xff]
    %v225 = vld [vmem:[%s5 + $0x30] sm:$0xff]
    %v226 = vld [vmem:[%s5 + $0x38] sm:$0xff]
    %v227 = vld [vmem:[%s6] sm:$0x1]
    %v229 = vlaneseq
    %v230 = vshrl.u32 %v229, 7
    %v231 = vsub.s32 0, %v230
    %v232 = vrot.slane %v227, %v231
    %v235 = vsel %vm135, %v217, 0
    %v238 = vsel %vm135, %v218, 0
    %240 = vmatprep.subr.mxu0 0.0
    %241 = vmatpush1.msra.mxu0 %v219
    %242 = vmatprep.subr.mxu0 0.0
    %243 = vmatpush1.msra.mxu0 %v220
    %244 = vmatprep.subr.mxu0 0.0
    %245 = vmatpush1.msra.mxu0 %v221
    %246 = vmatprep.subr.mxu0 0.0
    %247 = vmatpush1.msra.mxu0 %v222
    %248 = vmatprep.subr.mxu0 0.0
    %249 = vmatpush1.msra.mxu0 %v223
    %250 = vmatprep.subr.mxu0 0.0
    %251 = vmatpush1.msra.mxu0 %v224
    %252 = vmatprep.subr.mxu0 0.0
    %253 = vmatpush1.msra.mxu0 %v225
    %254 = vmatprep.subr.mxu0 0.0
    %255 = vmatpush1.msra.mxu0 %v226
    %256 = vmatprep.subr.mxu0 0.0
    %257 = vmatpush1.msra.mxu0 0.0
    %258 = vmatprep.subr.mxu0 0.0
    %259 = vmatpush1.msra.mxu0 0.0
    %260 = vmatprep.subr.mxu0 0.0
    %261 = vmatpush1.msra.mxu0 0.0
    %262 = vmatprep.subr.mxu0 0.0
    %263 = vmatpush1.msra.mxu0 0.0
    %264 = vmatprep.subr.mxu0 0.0
    %265 = vmatpush1.msra.mxu0 0.0
    %266 = vmatprep.subr.mxu0 0.0
    %267 = vmatpush1.msra.mxu0 0.0
    %268 = vmatprep.subr.mxu0 0.0
    %269 = vmatpush1.msra.mxu0 0.0
    %270 = vmatprep.subr.mxu0 0.0
    %271 = vmatpush1.msra.mxu0 0.0
    %272 = vmatprep.subr.mxu0 0.0
    %273 = vmatpush1.msra.mxu0 0.0
    %274 = vmatprep.subr.mxu0 0.0
    %275 = vmatpush1.msra.mxu0 0.0
    %276 = vmatprep.subr.mxu0 0.0
    %277 = vmatpush1.msra.mxu0 0.0
    %278 = vmatprep.subr.mxu0 0.0
    %279 = vmatpush1.msra.mxu0 0.0
    %280 = vmatprep.subr.mxu0 0.0
    %281 = vmatpush1.msra.mxu0 0.0
    %282 = vmatprep.subr.mxu0 0.0
    %283 = vmatpush1.msra.mxu0 0.0
    %284 = vmatprep.subr.mxu0 0.0
    %285 = vmatpush1.msra.mxu0 0.0
    %286 = vmatprep.subr.mxu0 0.0
    %287 = vmatpush1.msra.mxu0 0.0
    %288 = vmatprep.subr.mxu0 0.0
    %289 = vmatpush1.msra.mxu0 0.0
    %290 = vmatprep.subr.mxu0 0.0
    %291 = vmatpush1.msra.mxu0 0.0
    %292 = vmatprep.subr.mxu0 0.0
    %293 = vmatpush1.msra.mxu0 0.0
    %294 = vmatprep.subr.mxu0 0.0
    %295 = vmatpush1.msra.mxu0 0.0
    %296 = vmatprep.subr.mxu0 0.0
    %297 = vmatpush1.msra.mxu0 0.0
    %298 = vmatprep.subr.mxu0 0.0
    %299 = vmatpush1.msra.mxu0 0.0
    %300 = vmatprep.subr.mxu0 0.0
    %301 = vmatpush1.msra.mxu0 0.0
    %302 = vmatprep.subr.mxu0 0.0
    %303 = vmatpush1.msra.mxu0 0.0
    %304 = vmatprep.mubr.f32.mxu0 0.0
    %305 = vmatmul.mubr.f32.gmra.mrb[0].mxu0 %v235
    %v306 = vpop.f32.mrb[0].mxu0
    %v307 = vadd.f32 %v232, %v306
    %v308 = vpop.f32.mrb[0].mxu0
    %309 = vmatprep.mubr.f32.mxu0 0.0
    %310 = vmatmul.mubr.f32.gmra.mrb[0].mxu0 %v238
    %v311 = vpop.f32.mrb[0].mxu0
    %v312 = vadd.f32 %v232, %v311
    %v313 = vpop.f32.mrb[0].mxu0
    %314 = vdwg.mxu0
    %315 = vst.msk [vmem:[#allocation2] sm:$0xff] %vm36, %v307
    %316 = vst.msk [vmem:[#allocation2 + $0x8] sm:$0xff] %vm36, %v312
    // Predicated region
    $region30: #{dqn_forward.1} parent=1 // pred_check
      _
    $region31: #{dqn_forward.1} parent=1 // pred_check_branch
      %318 = sbr.rel (0) target = $region33
    $region32: #{dqn_forward.1} parent=1 // pred_region
      // Predicated region
      $region34: #{dqn_forward.1} parent=32 // pred_check
        _
      $region35: #{dqn_forward.1} parent=32 // pred_check_branch
        %320 = sbr.rel (0) target = $region37
      $region36: #{dqn_forward.1} parent=32 // pred_region
        // Predicated region
        $region38: #{dqn_forward.1} parent=36 // pred_check
          _
        $region39: #{dqn_forward.1} parent=36 // pred_check_branch
          %322 = sbr.rel target = $region41
        $region40: #{dqn_forward.1} parent=36 // pred_region
          // Predicated region
          $region53: #{dqn_forward.1} parent=40 // pred_check
            _
          $region54: #{dqn_forward.1} parent=40 // pred_check_branch
            %337 = sbr.rel (0) target = $region56
          $region55: #{dqn_forward.1} parent=40 // pred_region
            loop: start=0, step=1, limit=1
            $region57: #{dqn_forward.1} parent=55 // loop_pre_header
              _
            $region58: #{dqn_forward.1} parent=55 // loop_header
              %s340 = sphi 0, %s344
              %p341 = scmp.ge.s32.totalorder %s340, 1
              %s345 = sphi [#allocation2], [#allocation2]
              %s346 = sphi %s7, %s7
            $region59: #{dqn_forward.1} parent=55 // loop_header_branch
              %343 = sbr.rel (%p341) target = $region63
            $region60: #{dqn_forward.1} parent=55 // loop_body
              %v347 = vld [vmem:[%s345] sm:$0x1]
              %348 = vst [vmem:[%s346] sm:$0x1] %v347
            $region61: #{dqn_forward.1} parent=55 // loop_footer
              %s344 = sadd.s32 1, %s340
            $region62: #{dqn_forward.1} parent=55 // loop_footer_branch
              %339 = sbr.rel target = $region58
            $region63: #{dqn_forward.1} parent=55 // loop_exit
              _
          $region56: #{dqn_forward.1} parent=40 // pred_fallthru
            _
        $region41: #{dqn_forward.1} parent=36 // pred_fallthru
          _
        // Predicated region
        $region42: #{dqn_forward.1} parent=36 // pred_check
          _
        $region43: #{dqn_forward.1} parent=36 // pred_check_branch
          %324 = sbr.rel (0) target = $region45
        $region44: #{dqn_forward.1} parent=36 // pred_region
          loop: start=0, step=1, limit=1
          $region46: #{dqn_forward.1} parent=44 // loop_pre_header
            _
          $region47: #{dqn_forward.1} parent=44 // loop_header
            %s327 = sphi 0, %s331
            %p328 = scmp.ge.s32.totalorder %s327, 1
            %s332 = sphi [#allocation2], [#allocation2]
            %s333 = sphi %s7, %s7
          $region48: #{dqn_forward.1} parent=44 // loop_header_branch
            %330 = sbr.rel (%p328) target = $region52
          $region49: #{dqn_forward.1} parent=44 // loop_body
            %v334 = vld [vmem:[%s332] sm:$0x1]
            %335 = vst [vmem:[%s333] sm:$0x1] %v334
          $region50: #{dqn_forward.1} parent=44 // loop_footer
            %s331 = sadd.s32 1, %s327
          $region51: #{dqn_forward.1} parent=44 // loop_footer_branch
            %326 = sbr.rel target = $region47
          $region52: #{dqn_forward.1} parent=44 // loop_exit
            _
        $region45: #{dqn_forward.1} parent=36 // pred_fallthru
          _
      $region37: #{dqn_forward.1} parent=32 // pred_fallthru
        _
      %349 = vnop
    $region33: #{dqn_forward.1} parent=1 // pred_fallthru
      _
    // Predicated region
    $region64: #{dqn_forward.1} parent=1 // pred_check
      _
    $region65: #{dqn_forward.1} parent=1 // pred_check_branch
      %351 = sbr.rel (0) target = $region67
    $region66: #{dqn_forward.1} parent=1 // pred_region
      _
    $region67: #{dqn_forward.1} parent=1 // pred_fallthru
      _

</llo_original>
